<compile_context>
chip_gen: v7x
topology: tpu7x:2x2x1
jax: 0.10.0
libtpu: 0.0.40
codegen_flags: <defaults>
</compile_context>

<pallas_src>
import jax
import jax.numpy as jnp
from jax.experimental import pallas as pl
from jax.experimental.pallas import tpu as pltpu

_LANE = 128     # TPU lane width   (last dim of every block)
_SUBLANE = 8    # TPU sublane width (second-to-last dim of every block)


def _round_up(n, m):
    return ((n + m - 1) // m) * m


def _fast_mish(x):
    """Mish(x) = x * tanh(softplus(x)) with a single transcendental.

    tanh(log1p(e^x)) == n / (n + 2) with n = e^x * (e^x + 2), so
        mish(x) = x * n * (1 / (n + 2)).
    The exp argument is clamped to [-30, 30]; outside that range the ratio has
    already saturated to 0 / 1 in float32, so the clamp does not change the
    result but avoids exp overflow.  One EUP exp + one approx reciprocal
    (EUP slot, near-free) instead of exp + log1p + tanh.
    """
    e = jnp.exp(jnp.clip(x, -30.0, 30.0))
    n = e * (e + 2.0)
    return x * n * pl.reciprocal(n + 2.0, approx=True)


def _residual_mlp_kernel(x_ref,
                         w_in_ref, b_in_ref,
                         w1_ref, b1_ref,
                         w2_ref, b2_ref,
                         w_out_ref, b_out_ref,
                         o_ref):
    # Activations stay float32 end-to-end (matches torch forward; v5e-friendly).
    # Weights may be bf16; accumulation is forced to f32 via
    # preferred_element_type.
    x = x_ref[...].astype(jnp.float32)

    # Hoist the bias loads once; each is a [1, F] row broadcast over the tile.
    b_in = b_in_ref[...]
    b1 = b1_ref[...]
    b2 = b2_ref[...]
    b_out = b_out_ref[...]

    # Input projection: d_in -> H
    h = jnp.dot(x, w_in_ref[...], preferred_element_type=jnp.float32) + b_in

    # TwoLayerPreActivationResNetLinear (dropout=0, no norm):
    #   h = h + L2(mish(L1(mish(h))))
    t = _fast_mish(h)
    t = jnp.dot(t, w1_ref[...], preferred_element_type=jnp.float32) + b1
    t = _fast_mish(t)
    t = jnp.dot(t, w2_ref[...], preferred_element_type=jnp.float32) + b2
    h = h + t

    # Output projection: H -> d_out (padded to a lane-dense 128-wide slab)
    o_ref[...] = jnp.dot(h, w_out_ref[...],
                         preferred_element_type=jnp.float32) + b_out


def _prepare_params(params, param_dtype):
    """Zero-pad every feature dim up to a multiple of 128 and cast the weight
    matrices to `param_dtype` (bf16 halves DMA/VMEM; padding with zeros keeps
    the math identical — padded hidden columns stay exactly 0 through Mish)."""
    def pad2d(a, rows, cols):
        a = jnp.asarray(a, jnp.float32)
        return jnp.pad(a, ((0, rows - a.shape[0]), (0, cols - a.shape[1])))

    d_in, hidden = params["w_in"].shape
    d_out = params["w_out"].shape[1]
    d_in_p = _round_up(d_in, _LANE)
    hidden_p = _round_up(hidden, _LANE)
    d_out_p = _round_up(d_out, _LANE)

    p = dict(
        w_in=pad2d(params["w_in"], d_in_p, hidden_p).astype(param_dtype),
        b_in=pad2d(jnp.asarray(params["b_in"]).reshape(1, -1), 1, hidden_p),
        w1=pad2d(params["w1"], hidden_p, hidden_p).astype(param_dtype),
        b1=pad2d(jnp.asarray(params["b1"]).reshape(1, -1), 1, hidden_p),
        w2=pad2d(params["w2"], hidden_p, hidden_p).astype(param_dtype),
        b2=pad2d(jnp.asarray(params["b2"]).reshape(1, -1), 1, hidden_p),
        w_out=pad2d(params["w_out"], hidden_p, d_out_p).astype(param_dtype),
        b_out=pad2d(jnp.asarray(params["b_out"]).reshape(1, -1), 1, d_out_p),
    )
    return p, (d_in, hidden, d_out), (d_in_p, hidden_p, d_out_p)


def residual_mlp_forward(x, params, *, param_dtype=jnp.bfloat16, max_tile_b=512):
    """x: [B, input_dim] float32.  params: dict of unpadded f32 weights/biases.

    Handles arbitrary B and arbitrary feature sizes by zero-padding to TPU
    tile alignment and slicing the result back.
    """
    B, d_in = x.shape
    p, (d_in0, hidden, d_out), (d_in_p, hidden_p, d_out_p) = _prepare_params(
        params, param_dtype)
    assert d_in == d_in0

    # Batch tiling: as large as reasonable, but keep >=2 grid steps when the
    # batch allows it so the "parallel" axis can shard across v7x's 2 TCs.
    tile_b = max(_SUBLANE, min(max_tile_b, _round_up(pl.cdiv(B, 2), _SUBLANE)))
    B_pad = _round_up(B, tile_b)

    x_pad = jnp.pad(x.astype(jnp.float32),
                    ((0, B_pad - B), (0, d_in_p - d_in)))

    def replicated(shape):
        # Constant index_map: the tile is DMA'd once and stays resident
        # across grid steps (no per-step weight traffic).
        return pl.BlockSpec(shape, lambda i: (0, 0))

    grid = (B_pad // tile_b,)
    out_pad = pl.pallas_call(
        _residual_mlp_kernel,
        out_shape=jax.ShapeDtypeStruct((B_pad, d_out_p), jnp.float32),
        grid_spec=pltpu.PrefetchScalarGridSpec(
            num_scalar_prefetch=0,
            grid=grid,
            in_specs=[
                pl.BlockSpec((tile_b, d_in_p), lambda i: (i, 0)),   # x tile
                replicated(p["w_in"].shape), replicated(p["b_in"].shape),
                replicated(p["w1"].shape), replicated(p["b1"].shape),
                replicated(p["w2"].shape), replicated(p["b2"].shape),
                replicated(p["w_out"].shape), replicated(p["b_out"].shape),
            ],
            out_specs=pl.BlockSpec((tile_b, d_out_p), lambda i: (i, 0)),
        ),
        compiler_params=pltpu.CompilerParams(
            dimension_semantics=("parallel",),
            # Headroom over the 32 MiB scoped default, but below v7x's 64 MiB
            # physical VMEM so large hidden dims / tiles still compile there.
            vmem_limit_bytes=48 * 1024 * 1024,
        ),
    )(x_pad, p["w_in"], p["b_in"], p["w1"], p["b1"],
      p["w2"], p["b2"], p["w_out"], p["b_out"])

    return out_pad[:B, :d_out]


def init_params(key, input_dim, hidden_dim, output_dim):
    """Deterministic init mimicking nn.Linear default (U(-1/sqrt(fan_in), +))."""
    ks = jax.random.split(key, 8)

    def linear(kw, kb, fan_in, fan_out):
        bound = 1.0 / jnp.sqrt(jnp.float32(fan_in))
        w = jax.random.uniform(kw, (fan_in, fan_out), jnp.float32, -bound, bound)
        b = jax.random.uniform(kb, (1, fan_out), jnp.float32, -bound, bound)
        return w, b

    w_in, b_in = linear(ks[0], ks[1], input_dim, hidden_dim)
    w1, b1 = linear(ks[2], ks[3], hidden_dim, hidden_dim)
    w2, b2 = linear(ks[4], ks[5], hidden_dim, hidden_dim)
    w_out, b_out = linear(ks[6], ks[7], hidden_dim, output_dim)
    return dict(w_in=w_in, b_in=b_in, w1=w1, b1=b1, w2=w2, b2=b2,
                w_out=w_out, b_out=b_out)


def reference_forward(x, params, *, param_dtype=jnp.bfloat16):
    """Pure-JAX reference using the same (bf16-rounded) weights as the kernel."""
    hi = jax.lax.Precision.HIGHEST

    def w(name):
        return params[name].astype(param_dtype).astype(jnp.float32)

    def mish(v):
        return v * jnp.tanh(jax.nn.softplus(v))

    x = x.astype(jnp.float32)
    h = jnp.dot(x, w("w_in"), precision=hi) + params["b_in"]
    t = mish(h)
    t = jnp.dot(t, w("w1"), precision=hi) + params["b1"]
    t = mish(t)
    t = jnp.dot(t, w("w2"), precision=hi) + params["b2"]
    h = h + t
    return jnp.dot(h, w("w_out"), precision=hi) + params["b_out"]


if __name__ == "__main__":
    # Small shapes consistent with the module: batch=16, input_dim=16,
    # hidden_dim=32, output_dim=1, num_hidden_layers=2 (one residual block).
    key = jax.random.PRNGKey(0)
    k_x, k_p = jax.random.split(key)

    B, input_dim, hidden_dim, output_dim = 16, 16, 32, 1
    x = jax.random.normal(k_x, (B, input_dim), dtype=jnp.float32)
    params = init_params(k_p, input_dim, hidden_dim, output_dim)

    out = residual_mlp_forward(x, params)
    out = jax.block_until_ready(out)

    ref = reference_forward(x, params)
    assert out.shape == (B, output_dim)
    # bf16 weights (applied to both) + approx-reciprocal Mish + MXU
    # accumulation-order differences -> modest tolerance.
    err = float(jnp.max(jnp.abs(out - ref)))
    assert jnp.allclose(out, ref, atol=1e-2, rtol=1e-2), err

    print("KERNEL_OK")
</pallas_src>

<mosaic_0001>
module attributes {stable_mosaic.version = 11 : i64} {
  func.func @_residual_mlp_kernel(%arg0: i32, %arg1: memref<8x128xf32, #tpu.memory_space<vmem>>, %arg2: memref<128x128xbf16, #tpu.memory_space<vmem>>, %arg3: memref<1x128xf32, #tpu.memory_space<vmem>>, %arg4: memref<128x128xbf16, #tpu.memory_space<vmem>>, %arg5: memref<1x128xf32, #tpu.memory_space<vmem>>, %arg6: memref<128x128xbf16, #tpu.memory_space<vmem>>, %arg7: memref<1x128xf32, #tpu.memory_space<vmem>>, %arg8: memref<128x128xbf16, #tpu.memory_space<vmem>>, %arg9: memref<1x128xf32, #tpu.memory_space<vmem>>, %arg10: memref<8x128xf32, #tpu.memory_space<vmem>>) attributes {dimension_semantics = [#tpu.dimension_semantics<parallel>], iteration_bounds = array<i64: 2>, scalar_prefetch = 0 : i64, scratch_operands = 0 : i64, tpu.core_type = #tpu.core_type<tc>, window_params = [{transform_indices = @transform_0, window_bounds = array<i64: 8, 128>}, {pipeline_mode = #tpu.pipeline_mode<synchronous>, transform_indices = @transform_1, window_bounds = array<i64: 128, 128>}, {pipeline_mode = #tpu.pipeline_mode<synchronous>, transform_indices = @transform_2, window_bounds = array<i64: 1, 128>}, {pipeline_mode = #tpu.pipeline_mode<synchronous>, transform_indices = @transform_3, window_bounds = array<i64: 128, 128>}, {pipeline_mode = #tpu.pipeline_mode<synchronous>, transform_indices = @transform_4, window_bounds = array<i64: 1, 128>}, {pipeline_mode = #tpu.pipeline_mode<synchronous>, transform_indices = @transform_5, window_bounds = array<i64: 128, 128>}, {pipeline_mode = #tpu.pipeline_mode<synchronous>, transform_indices = @transform_6, window_bounds = array<i64: 1, 128>}, {pipeline_mode = #tpu.pipeline_mode<synchronous>, transform_indices = @transform_7, window_bounds = array<i64: 128, 128>}, {pipeline_mode = #tpu.pipeline_mode<synchronous>, transform_indices = @transform_8, window_bounds = array<i64: 1, 128>}, {transform_indices = @transform_9, window_bounds = array<i64: 8, 128>}]} {
    %c0 = arith.constant 0 : index
    %c0_0 = arith.constant 0 : index
    %0 = vector.load %arg1[%c0, %c0_0] : memref<8x128xf32, #tpu.memory_space<vmem>>, vector<8x128xf32>
    %c0_1 = arith.constant 0 : index
    %c0_2 = arith.constant 0 : index
    %1 = vector.load %arg3[%c0_1, %c0_2] : memref<1x128xf32, #tpu.memory_space<vmem>>, vector<1x128xf32>
    %c0_3 = arith.constant 0 : index
    %c0_4 = arith.constant 0 : index
    %2 = vector.load %arg5[%c0_3, %c0_4] : memref<1x128xf32, #tpu.memory_space<vmem>>, vector<1x128xf32>
    %c0_5 = arith.constant 0 : index
    %c0_6 = arith.constant 0 : index
    %3 = vector.load %arg7[%c0_5, %c0_6] : memref<1x128xf32, #tpu.memory_space<vmem>>, vector<1x128xf32>
    %c0_7 = arith.constant 0 : index
    %c0_8 = arith.constant 0 : index
    %4 = vector.load %arg9[%c0_7, %c0_8] : memref<1x128xf32, #tpu.memory_space<vmem>>, vector<1x128xf32>
    %c0_9 = arith.constant 0 : index
    %c0_10 = arith.constant 0 : index
    %5 = vector.load %arg2[%c0_9, %c0_10] : memref<128x128xbf16, #tpu.memory_space<vmem>>, vector<128x128xbf16>
    %cst = arith.constant dense<0.000000e+00> : vector<8x128xf32>
    %6 = tpu.matmul %0, %5, %cst {dimension_numbers = #tpu.dot_dimension_numbers<[1], [0], [0], [1], [0, 0, 1, 1], [], []>} : vector<8x128xf32>, vector<128x128xbf16>, vector<8x128xf32> -> vector<8x128xf32>
    %7 = vector.broadcast %1 : vector<1x128xf32> to vector<8x128xf32>
    %8 = arith.addf %6, %7 : vector<8x128xf32>
    %cst_11 = arith.constant -3.000000e+01 : f32
    %cst_12 = arith.constant 3.000000e+01 : f32
    %9 = vector.broadcast %cst_11 : f32 to vector<8x128xf32>
    %10 = arith.maximumf %9, %8 : vector<8x128xf32>
    %11 = vector.broadcast %cst_12 : f32 to vector<8x128xf32>
    %12 = arith.minimumf %11, %10 : vector<8x128xf32>
    %13 = math.exp %12 : vector<8x128xf32>
    %cst_13 = arith.constant 2.000000e+00 : f32
    %14 = vector.broadcast %cst_13 : f32 to vector<8x128xf32>
    %15 = arith.addf %13, %14 : vector<8x128xf32>
    %16 = arith.mulf %13, %15 : vector<8x128xf32>
    %17 = arith.mulf %8, %16 : vector<8x128xf32>
    %cst_14 = arith.constant 2.000000e+00 : f32
    %18 = vector.broadcast %cst_14 : f32 to vector<8x128xf32>
    %19 = arith.addf %16, %18 : vector<8x128xf32>
    %20 = tpu.reciprocal %19 {approx = true} : vector<8x128xf32> -> vector<8x128xf32>
    %21 = arith.mulf %17, %20 : vector<8x128xf32>
    %c0_15 = arith.constant 0 : index
    %c0_16 = arith.constant 0 : index
    %22 = vector.load %arg4[%c0_15, %c0_16] : memref<128x128xbf16, #tpu.memory_space<vmem>>, vector<128x128xbf16>
    %cst_17 = arith.constant dense<0.000000e+00> : vector<8x128xf32>
    %23 = tpu.matmul %21, %22, %cst_17 {dimension_numbers = #tpu.dot_dimension_numbers<[1], [0], [0], [1], [0, 0, 1, 1], [], []>} : vector<8x128xf32>, vector<128x128xbf16>, vector<8x128xf32> -> vector<8x128xf32>
    %24 = vector.broadcast %2 : vector<1x128xf32> to vector<8x128xf32>
    %25 = arith.addf %23, %24 : vector<8x128xf32>
    %cst_18 = arith.constant -3.000000e+01 : f32
    %cst_19 = arith.constant 3.000000e+01 : f32
    %26 = vector.broadcast %cst_18 : f32 to vector<8x128xf32>
    %27 = arith.maximumf %26, %25 : vector<8x128xf32>
    %28 = vector.broadcast %cst_19 : f32 to vector<8x128xf32>
    %29 = arith.minimumf %28, %27 : vector<8x128xf32>
    %30 = math.exp %29 : vector<8x128xf32>
    %cst_20 = arith.constant 2.000000e+00 : f32
    %31 = vector.broadcast %cst_20 : f32 to vector<8x128xf32>
    %32 = arith.addf %30, %31 : vector<8x128xf32>
    %33 = arith.mulf %30, %32 : vector<8x128xf32>
    %34 = arith.mulf %25, %33 : vector<8x128xf32>
    %cst_21 = arith.constant 2.000000e+00 : f32
    %35 = vector.broadcast %cst_21 : f32 to vector<8x128xf32>
    %36 = arith.addf %33, %35 : vector<8x128xf32>
    %37 = tpu.reciprocal %36 {approx = true} : vector<8x128xf32> -> vector<8x128xf32>
    %38 = arith.mulf %34, %37 : vector<8x128xf32>
    %c0_22 = arith.constant 0 : index
    %c0_23 = arith.constant 0 : index
    %39 = vector.load %arg6[%c0_22, %c0_23] : memref<128x128xbf16, #tpu.memory_space<vmem>>, vector<128x128xbf16>
    %cst_24 = arith.constant dense<0.000000e+00> : vector<8x128xf32>
    %40 = tpu.matmul %38, %39, %cst_24 {dimension_numbers = #tpu.dot_dimension_numbers<[1], [0], [0], [1], [0, 0, 1, 1], [], []>} : vector<8x128xf32>, vector<128x128xbf16>, vector<8x128xf32> -> vector<8x128xf32>
    %41 = vector.broadcast %3 : vector<1x128xf32> to vector<8x128xf32>
    %42 = arith.addf %40, %41 : vector<8x128xf32>
    %43 = arith.addf %8, %42 : vector<8x128xf32>
    %c0_25 = arith.constant 0 : index
    %c0_26 = arith.constant 0 : index
    %44 = vector.load %arg8[%c0_25, %c0_26] : memref<128x128xbf16, #tpu.memory_space<vmem>>, vector<128x128xbf16>
    %cst_27 = arith.constant dense<0.000000e+00> : vector<8x128xf32>
    %45 = tpu.matmul %43, %44, %cst_27 {dimension_numbers = #tpu.dot_dimension_numbers<[1], [0], [0], [1], [0, 0, 1, 1], [], []>} : vector<8x128xf32>, vector<128x128xbf16>, vector<8x128xf32> -> vector<8x128xf32>
    %46 = vector.broadcast %4 : vector<1x128xf32> to vector<8x128xf32>
    %47 = arith.addf %45, %46 : vector<8x128xf32>
    %c0_28 = arith.constant 0 : index
    %c0_29 = arith.constant 0 : index
    %48 = vector.load %arg10[%c0_28, %c0_29] : memref<8x128xf32, #tpu.memory_space<vmem>>, vector<8x128xf32>
    tpu.vector_store %arg10[%c0_28, %c0_29], %47 {strides = array<i32>} : memref<8x128xf32, #tpu.memory_space<vmem>>, vector<8x128xf32>,
    return
  }
  func.func @transform_0(%arg0: i32) -> (i32, i32) {
    %c0_i32 = arith.constant 0 : i32
    %c0_i32_0 = arith.constant 0 : i32
    return %arg0, %c0_i32 : i32, i32
  }
  func.func @transform_1(%arg0: i32) -> (i32, i32) {
    %c0_i32 = arith.constant 0 : i32
    %c0_i32_0 = arith.constant 0 : i32
    %c0_i32_1 = arith.constant 0 : i32
    return %c0_i32, %c0_i32_0 : i32, i32
  }
  func.func @transform_2(%arg0: i32) -> (i32, i32) {
    %c0_i32 = arith.constant 0 : i32
    %c0_i32_0 = arith.constant 0 : i32
    %c0_i32_1 = arith.constant 0 : i32
    return %c0_i32, %c0_i32_0 : i32, i32
  }
  func.func @transform_3(%arg0: i32) -> (i32, i32) {
    %c0_i32 = arith.constant 0 : i32
    %c0_i32_0 = arith.constant 0 : i32
    %c0_i32_1 = arith.constant 0 : i32
    return %c0_i32, %c0_i32_0 : i32, i32
  }
  func.func @transform_4(%arg0: i32) -> (i32, i32) {
    %c0_i32 = arith.constant 0 : i32
    %c0_i32_0 = arith.constant 0 : i32
    %c0_i32_1 = arith.constant 0 : i32
    return %c0_i32, %c0_i32_0 : i32, i32
  }
  func.func @transform_5(%arg0: i32) -> (i32, i32) {
    %c0_i32 = arith.constant 0 : i32
    %c0_i32_0 = arith.constant 0 : i32
    %c0_i32_1 = arith.constant 0 : i32
    return %c0_i32, %c0_i32_0 : i32, i32
  }
  func.func @transform_6(%arg0: i32) -> (i32, i32) {
    %c0_i32 = arith.constant 0 : i32
    %c0_i32_0 = arith.constant 0 : i32
    %c0_i32_1 = arith.constant 0 : i32
    return %c0_i32, %c0_i32_0 : i32, i32
  }
  func.func @transform_7(%arg0: i32) -> (i32, i32) {
    %c0_i32 = arith.constant 0 : i32
    %c0_i32_0 = arith.constant 0 : i32
    %c0_i32_1 = arith.constant 0 : i32
    return %c0_i32, %c0_i32_0 : i32, i32
  }
  func.func @transform_8(%arg0: i32) -> (i32, i32) {
    %c0_i32 = arith.constant 0 : i32
    %c0_i32_0 = arith.constant 0 : i32
    %c0_i32_1 = arith.constant 0 : i32
    return %c0_i32, %c0_i32_0 : i32, i32
  }
  func.func @transform_9(%arg0: i32) -> (i32, i32) {
    %c0_i32 = arith.constant 0 : i32
    %c0_i32_0 = arith.constant 0 : i32
    return %arg0, %c0_i32 : i32, i32
  }
}

</mosaic_0001>

<llo_original>
// kernel: tpu_custom_call.1
$region0: #{tpu_custom_call.1}
  #allocation0 [shape = 'u32[]', space=smem, size = 0x4, offset = 0x4, fixed_abs, tag = 'smem constant byte address 0x4 - core index']
  #allocation1 [shape = 'u32[144,128]{1,0:T(1,128)}', space=vmem, size = 0x12000, scoped, tag = 'internal scratch']
  %s0 = inlined_call_operand.hbm [shape: f32[16,128], index: 0, kind: input, shape index: {}]
  %s1 = inlined_call_operand.hbm [shape: bf16[128,128], index: 1, kind: input, shape index: {}]
  %s2 = inlined_call_operand.vmem [shape: f32[1,128], index: 2, kind: input, shape index: {}]
  %s3 = inlined_call_operand.hbm [shape: bf16[128,128], index: 3, kind: input, shape index: {}]
  %s4 = inlined_call_operand.vmem [shape: f32[1,128], index: 4, kind: input, shape index: {}]
  %s5 = inlined_call_operand.hbm [shape: bf16[128,128], index: 5, kind: input, shape index: {}]
  %s6 = inlined_call_operand.vmem [shape: f32[1,128], index: 6, kind: input, shape index: {}]
  %s7 = inlined_call_operand.hbm [shape: bf16[128,128], index: 7, kind: input, shape index: {}]
  %s8 = inlined_call_operand.vmem [shape: f32[1,128], index: 8, kind: input, shape index: {}]
  %s9 = inlined_call_operand.hbm [shape: f32[16,128], index: 9, kind: output, shape index: {}]
  %s10 = sld [smem:[#allocation0]]
  $region89: #{tpu_custom_call.1} parent=0
    _
  %s12 = ssub.s32 1, %s10
  %s13 = scalar_select 0, %s12, %s10
  $region1: #{tpu_custom_call.1} parent=0
    #allocation2 [shape = 'u8[8192]{0}', space=vmem, size = 0x2000, scoped, tag = 'input window, operand 0']
    #allocation3 [shape = 's32[2]{0}', space=sflag, size = 0x8, scoped, tag = 'scoped memory for tpu_custom_call.1']
    #allocation4 [shape = 's32[2]{0}', space=sflag, size = 0x8, scoped, tag = 'scoped memory for tpu_custom_call.1']
    #allocation5 [shape = 'u8[32768]{0}', space=vmem, size = 0x8000, scoped, tag = 'input window, operand 1, single buffered']
    #allocation6 [shape = 's32[1]{0}', space=sflag, size = 0x4, scoped, tag = 'scoped memory for tpu_custom_call.1']
    #allocation7 [shape = 'u8[32768]{0}', space=vmem, size = 0x8000, scoped, tag = 'input window, operand 3, single buffered']
    #allocation8 [shape = 'u8[32768]{0}', space=vmem, size = 0x8000, scoped, tag = 'input window, operand 5, single buffered']
    #allocation9 [shape = 's32[1]{0}', space=sflag, size = 0x4, scoped, tag = 'scoped memory for tpu_custom_call.1']
    #allocation10 [shape = 'u8[32768]{0}', space=vmem, size = 0x8000, scoped, tag = 'input window, operand 7, single buffered']
    #allocation11 [shape = 'u8[8192]{0}', space=vmem, size = 0x2000, scoped, tag = 'output window, operand 0']
    %14 = vsyncpa [#allocation3], 0
    %s15 = scalar_lea.sflag [#allocation3], 1
    %16 = vsyncpa %s15, 0
    %17 = vsyncpa [#allocation6], 0
    %18 = vsyncpa [#allocation9], 0
    %19 = vsyncpa [#allocation4], 0
    %s20 = scalar_lea.sflag [#allocation4], 1
    %21 = vsyncpa %s20, 0
    loop: start=0, step=1, limit=4
    $region2: #{tpu_custom_call.1} parent=1 // loop_pre_header
      _
    $region3: #{tpu_custom_call.1} parent=1 // loop_header
      %s23 = sphi 0, %s27
      %p24 = scmp.ge.s32.totalorder %s23, 4
      %s33 = sphi 0, %s35
      %s36 = sphi 0, %s33
      %s37 = sphi 0, %s36
      %s53 = sphi 0, %s37
      %s57 = sphi 0, %s57
      %s59 = sphi 0, %s57
      %s60 = sphi 0, %s59
      %s74 = sphi 0, %s60
      %s78 = sphi 0, %s78
      %s80 = sphi 0, %s78
      %s81 = sphi 0, %s80
      %s95 = sphi 0, %s81
      %s99 = sphi 0, %s99
      %s101 = sphi 0, %s99
      %s102 = sphi 0, %s101
      %s116 = sphi 0, %s102
      %s120 = sphi 0, %s120
      %s122 = sphi 0, %s120
      %s123 = sphi 0, %s122
      %s137 = sphi 0, %s123
      %s141 = sphi 0, %s141
      %s143 = sphi 0, %s141
      %s144 = sphi 0, %s143
      %s158 = sphi 0, %s144
      %s162 = sphi 0, %s162
      %s164 = sphi 0, %s162
      %s165 = sphi 0, %s164
      %s179 = sphi 0, %s165
      %s183 = sphi 0, %s183
      %s185 = sphi 0, %s183
      %s186 = sphi 0, %s185
      %s200 = sphi 0, %s186
      %s204 = sphi 0, %s204
      %s206 = sphi 0, %s204
      %s207 = sphi 0, %s206
      %s221 = sphi 0, %s207
      %s227 = sphi 0, %s229
      %s230 = sphi 0, %s227
      %s231 = sphi 0, %s230
      %s247 = sphi 0, %s231
    $region4: #{tpu_custom_call.1} parent=1 // loop_header_branch
      %26 = sbr.rel (%p24) target = $region8
    $region5: #{tpu_custom_call.1} parent=1 // loop_body
      %s28 = ssub.s32 %s23, 1
      %s29 = ssub.s32 %s23, 2
      %s30 = sadd.s32 %s23, 1
      %s31 = ssub.s32 %s23, %s30
      %p32 = scmp.eq.s32.totalorder %s31, 0
      %s34 = sadd.s32 %s33, 1
      %s35 = scalar_select %p32, %s33, %s34
      %p38 = pneg %p32
      %p39 = scmp.eq.s32.totalorder %s23, 1
      %p40 = por %p38, %p39
      %p41 = scmp.ne.s32.totalorder %s33, %s36
      %p42 = scmp.eq.s32.totalorder %s23, 0
      %p43 = por %p41, %p42
      %p44 = scmp.ne.s32.totalorder %s33, %s36
      %p45 = scmp.eq.s32.totalorder %s28, 1
      %p46 = por %p44, %p45
      %p47 = scmp.ne.s32.totalorder %s36, %s37
      %p48 = scmp.eq.s32.totalorder %s28, 0
      %p49 = por %p47, %p48
      %p50 = scmp.ne.s32.totalorder %s36, %s37
      %p51 = scmp.eq.s32.totalorder %s29, 1
      %p52 = por %p50, %p51
      %p54 = scmp.ne.s32.totalorder %s37, %s53
      %p55 = scmp.eq.s32.totalorder %s29, 0
      %p56 = por %p54, %p55
      %s58 = sadd.s32 %s57, 1
      %p61 = scmp.eq.s32.totalorder %s23, 1
      %p62 = scmp.ne.s32.totalorder %s57, %s59
      %p63 = scmp.eq.s32.totalorder %s23, 0
      %p64 = por %p62, %p63
      %p65 = scmp.ne.s32.totalorder %s57, %s59
      %p66 = scmp.eq.s32.totalorder %s28, 1
      %p67 = por %p65, %p66
      %p68 = scmp.ne.s32.totalorder %s59, %s60
      %p69 = scmp.eq.s32.totalorder %s28, 0
      %p70 = por %p68, %p69
      %p71 = scmp.ne.s32.totalorder %s59, %s60
      %p72 = scmp.eq.s32.totalorder %s29, 1
      %p73 = por %p71, %p72
      %p75 = scmp.ne.s32.totalorder %s60, %s74
      %p76 = scmp.eq.s32.totalorder %s29, 0
      %p77 = por %p75, %p76
      %s79 = sadd.s32 %s78, 1
      %p82 = scmp.eq.s32.totalorder %s23, 1
      %p83 = scmp.ne.s32.totalorder %s78, %s80
      %p84 = scmp.eq.s32.totalorder %s23, 0
      %p85 = por %p83, %p84
      %p86 = scmp.ne.s32.totalorder %s78, %s80
      %p87 = scmp.eq.s32.totalorder %s28, 1
      %p88 = por %p86, %p87
      %p89 = scmp.ne.s32.totalorder %s80, %s81
      %p90 = scmp.eq.s32.totalorder %s28, 0
      %p91 = por %p89, %p90
      %p92 = scmp.ne.s32.totalorder %s80, %s81
      %p93 = scmp.eq.s32.totalorder %s29, 1
      %p94 = por %p92, %p93
      %p96 = scmp.ne.s32.totalorder %s81, %s95
      %p97 = scmp.eq.s32.totalorder %s29, 0
      %p98 = por %p96, %p97
      %s100 = sadd.s32 %s99, 1
      %p103 = scmp.eq.s32.totalorder %s23, 1
      %p104 = scmp.ne.s32.totalorder %s99, %s101
      %p105 = scmp.eq.s32.totalorder %s23, 0
      %p106 = por %p104, %p105
      %p107 = scmp.ne.s32.totalorder %s99, %s101
      %p108 = scmp.eq.s32.totalorder %s28, 1
      %p109 = por %p107, %p108
      %p110 = scmp.ne.s32.totalorder %s101, %s102
      %p111 = scmp.eq.s32.totalorder %s28, 0
      %p112 = por %p110, %p111
      %p113 = scmp.ne.s32.totalorder %s101, %s102
      %p114 = scmp.eq.s32.totalorder %s29, 1
      %p115 = por %p113, %p114
      %p117 = scmp.ne.s32.totalorder %s102, %s116
      %p118 = scmp.eq.s32.totalorder %s29, 0
      %p119 = por %p117, %p118
      %s121 = sadd.s32 %s120, 1
      %p124 = scmp.eq.s32.totalorder %s23, 1
      %p125 = scmp.ne.s32.totalorder %s120, %s122
      %p126 = scmp.eq.s32.totalorder %s23, 0
      %p127 = por %p125, %p126
      %p128 = scmp.ne.s32.totalorder %s120, %s122
      %p129 = scmp.eq.s32.totalorder %s28, 1
      %p130 = por %p128, %p129
      %p131 = scmp.ne.s32.totalorder %s122, %s123
      %p132 = scmp.eq.s32.totalorder %s28, 0
      %p133 = por %p131, %p132
      %p134 = scmp.ne.s32.totalorder %s122, %s123
      %p135 = scmp.eq.s32.totalorder %s29, 1
      %p136 = por %p134, %p135
      %p138 = scmp.ne.s32.totalorder %s123, %s137
      %p139 = scmp.eq.s32.totalorder %s29, 0
      %p140 = por %p138, %p139
      %s142 = sadd.s32 %s141, 1
      %p145 = scmp.eq.s32.totalorder %s23, 1
      %p146 = scmp.ne.s32.totalorder %s141, %s143
      %p147 = scmp.eq.s32.totalorder %s23, 0
      %p148 = por %p146, %p147
      %p149 = scmp.ne.s32.totalorder %s141, %s143
      %p150 = scmp.eq.s32.totalorder %s28, 1
      %p151 = por %p149, %p150
      %p152 = scmp.ne.s32.totalorder %s143, %s144
      %p153 = scmp.eq.s32.totalorder %s28, 0
      %p154 = por %p152, %p153
      %p155 = scmp.ne.s32.totalorder %s143, %s144
      %p156 = scmp.eq.s32.totalorder %s29, 1
      %p157 = por %p155, %p156
      %p159 = scmp.ne.s32.totalorder %s144, %s158
      %p160 = scmp.eq.s32.totalorder %s29, 0
      %p161 = por %p159, %p160
      %s163 = sadd.s32 %s162, 1
      %p166 = scmp.eq.s32.totalorder %s23, 1
      %p167 = scmp.ne.s32.totalorder %s162, %s164
      %p168 = scmp.eq.s32.totalorder %s23, 0
      %p169 = por %p167, %p168
      %p170 = scmp.ne.s32.totalorder %s162, %s164
      %p171 = scmp.eq.s32.totalorder %s28, 1
      %p172 = por %p170, %p171
      %p173 = scmp.ne.s32.totalorder %s164, %s165
      %p174 = scmp.eq.s32.totalorder %s28, 0
      %p175 = por %p173, %p174
      %p176 = scmp.ne.s32.totalorder %s164, %s165
      %p177 = scmp.eq.s32.totalorder %s29, 1
      %p178 = por %p176, %p177
      %p180 = scmp.ne.s32.totalorder %s165, %s179
      %p181 = scmp.eq.s32.totalorder %s29, 0
      %p182 = por %p180, %p181
      %s184 = sadd.s32 %s183, 1
      %p187 = scmp.eq.s32.totalorder %s23, 1
      %p188 = scmp.ne.s32.totalorder %s183, %s185
      %p189 = scmp.eq.s32.totalorder %s23, 0
      %p190 = por %p188, %p189
      %p191 = scmp.ne.s32.totalorder %s183, %s185
      %p192 = scmp.eq.s32.totalorder %s28, 1
      %p193 = por %p191, %p192
      %p194 = scmp.ne.s32.totalorder %s185, %s186
      %p195 = scmp.eq.s32.totalorder %s28, 0
      %p196 = por %p194, %p195
      %p197 = scmp.ne.s32.totalorder %s185, %s186
      %p198 = scmp.eq.s32.totalorder %s29, 1
      %p199 = por %p197, %p198
      %p201 = scmp.ne.s32.totalorder %s186, %s200
      %p202 = scmp.eq.s32.totalorder %s29, 0
      %p203 = por %p201, %p202
      %s205 = sadd.s32 %s204, 1
      %p208 = scmp.eq.s32.totalorder %s23, 1
      %p209 = scmp.ne.s32.totalorder %s204, %s206
      %p210 = scmp.eq.s32.totalorder %s23, 0
      %p211 = por %p209, %p210
      %p212 = scmp.ne.s32.totalorder %s204, %s206
      %p213 = scmp.eq.s32.totalorder %s28, 1
      %p214 = por %p212, %p213
      %p215 = scmp.ne.s32.totalorder %s206, %s207
      %p216 = scmp.eq.s32.totalorder %s28, 0
      %p217 = por %p215, %p216
      %p218 = scmp.ne.s32.totalorder %s206, %s207
      %p219 = scmp.eq.s32.totalorder %s29, 1
      %p220 = por %p218, %p219
      %p222 = scmp.ne.s32.totalorder %s207, %s221
      %p223 = scmp.eq.s32.totalorder %s29, 0
      %p224 = por %p222, %p223
      %s225 = ssub.s32 %s23, %s30
      %p226 = scmp.eq.s32.totalorder %s225, 0
      %s228 = sadd.s32 %s227, 1
      %s229 = scalar_select %p226, %s227, %s228
      %p232 = pneg %p226
      %p233 = scmp.eq.s32.totalorder %s23, 1
      %p234 = por %p232, %p233
      %p235 = scmp.ne.s32.totalorder %s227, %s230
      %p236 = scmp.eq.s32.totalorder %s23, 0
      %p237 = por %p235, %p236
      %p238 = scmp.ne.s32.totalorder %s227, %s230
      %p239 = scmp.eq.s32.totalorder %s28, 1
      %p240 = por %p238, %p239
      %p241 = scmp.ne.s32.totalorder %s230, %s231
      %p242 = scmp.eq.s32.totalorder %s28, 0
      %p243 = por %p241, %p242
      %p244 = scmp.ne.s32.totalorder %s230, %s231
      %p245 = scmp.eq.s32.totalorder %s29, 1
      %p246 = por %p244, %p245
      %p248 = scmp.ne.s32.totalorder %s231, %s247
      %p249 = scmp.eq.s32.totalorder %s29, 0
      %p250 = por %p248, %p249
      %p251 = scmp.le.s32.totalorder 1, %s23
      %p252 = scmp.lt.s32.totalorder %s23, 3
      %p253 = pnand %p251, %p252
      %p254 = pneg %p253
      // Predicated region
      $region9: #{tpu_custom_call.1} parent=5 // pred_check
        _
      $region10: #{tpu_custom_call.1} parent=5 // pred_check_branch
        %256 = sbr.rel (%p253) target = $region12
      $region11: #{tpu_custom_call.1} parent=5 // pred_region
        %s257 = ssub.s32 %s23, 1
        // Predicated region
        $region13: #{tpu_custom_call.1} parent=11 // pred_check
          %p258 = pneg %p70
        $region14: #{tpu_custom_call.1} parent=11 // pred_check_branch
          %260 = sbr.rel (%p258) target = $region16
        $region15: #{tpu_custom_call.1} parent=11 // pred_region
          %s262 = ssub.s32 1024, 1024
          %263 = vsyncadd [#allocation6], %s262
          %s264 = sshll.u32 [#allocation5], 4
          %s265 = int_to_ptr.vmem [resolvable:$true] %s264
          %270 = dma.hbm_to_vmem [thread:$0]  %s1, 1024, %s265, [#allocation6], 64, 64, 4
        $region16: #{tpu_custom_call.1} parent=11 // pred_fallthru
          _
        // Predicated region
        $region17: #{tpu_custom_call.1} parent=11 // pred_check
          %p271 = pneg %p91
        $region18: #{tpu_custom_call.1} parent=11 // pred_check_branch
          %273 = sbr.rel (%p271) target = $region20
        $region19: #{tpu_custom_call.1} parent=11 // pred_region
          _
        $region20: #{tpu_custom_call.1} parent=11 // pred_fallthru
          _
        // Predicated region
        $region21: #{tpu_custom_call.1} parent=11 // pred_check
          %p274 = pneg %p112
        $region22: #{tpu_custom_call.1} parent=11 // pred_check_branch
          %276 = sbr.rel (%p274) target = $region24
        $region23: #{tpu_custom_call.1} parent=11 // pred_region
          %s278 = ssub.s32 1024, 1024
          %279 = vsyncadd [#allocation6], %s278
          %s280 = sshll.u32 [#allocation7], 4
          %s281 = int_to_ptr.vmem [resolvable:$true] %s280
          %286 = dma.hbm_to_vmem [thread:$0]  %s3, 1024, %s281, [#allocation6], 64, 64, 4
        $region24: #{tpu_custom_call.1} parent=11 // pred_fallthru
          _
        // Predicated region
        $region25: #{tpu_custom_call.1} parent=11 // pred_check
          %p287 = pneg %p133
        $region26: #{tpu_custom_call.1} parent=11 // pred_check_branch
          %289 = sbr.rel (%p287) target = $region28
        $region27: #{tpu_custom_call.1} parent=11 // pred_region
          _
        $region28: #{tpu_custom_call.1} parent=11 // pred_fallthru
          _
        // Predicated region
        $region29: #{tpu_custom_call.1} parent=11 // pred_check
          %p290 = pneg %p154
        $region30: #{tpu_custom_call.1} parent=11 // pred_check_branch
          %292 = sbr.rel (%p290) target = $region32
        $region31: #{tpu_custom_call.1} parent=11 // pred_region
          %s294 = ssub.s32 1024, 1024
          %295 = vsyncadd [#allocation9], %s294
          %s296 = sshll.u32 [#allocation8], 4
          %s297 = int_to_ptr.vmem [resolvable:$true] %s296
          %302 = dma.hbm_to_vmem [thread:$0]  %s5, 1024, %s297, [#allocation9], 64, 64, 4
        $region32: #{tpu_custom_call.1} parent=11 // pred_fallthru
          _
        // Predicated region
        $region33: #{tpu_custom_call.1} parent=11 // pred_check
          %p303 = pneg %p175
        $region34: #{tpu_custom_call.1} parent=11 // pred_check_branch
          %305 = sbr.rel (%p303) target = $region36
        $region35: #{tpu_custom_call.1} parent=11 // pred_region
          _
        $region36: #{tpu_custom_call.1} parent=11 // pred_fallthru
          _
        // Predicated region
        $region37: #{tpu_custom_call.1} parent=11 // pred_check
          %p306 = pneg %p196
        $region38: #{tpu_custom_call.1} parent=11 // pred_check_branch
          %308 = sbr.rel (%p306) target = $region40
        $region39: #{tpu_custom_call.1} parent=11 // pred_region
          %s310 = ssub.s32 1024, 1024
          %311 = vsyncadd [#allocation9], %s310
          %s312 = sshll.u32 [#allocation10], 4
          %s313 = int_to_ptr.vmem [resolvable:$true] %s312
          %318 = dma.hbm_to_vmem [thread:$0]  %s7, 1024, %s313, [#allocation9], 64, 64, 4
        $region40: #{tpu_custom_call.1} parent=11 // pred_fallthru
          _
        // Predicated region
        $region41: #{tpu_custom_call.1} parent=11 // pred_check
          %p319 = pneg %p217
        $region42: #{tpu_custom_call.1} parent=11 // pred_check_branch
          %321 = sbr.rel (%p319) target = $region44
        $region43: #{tpu_custom_call.1} parent=11 // pred_region
          _
        $region44: #{tpu_custom_call.1} parent=11 // pred_fallthru
          _
      $region12: #{tpu_custom_call.1} parent=5 // pred_fallthru
        _
      %p322 = scmp.lt.s32.totalorder %s23, 2
      // Predicated region
      $region45: #{tpu_custom_call.1} parent=5 // pred_check
        %p323 = pneg %p322
      $region46: #{tpu_custom_call.1} parent=5 // pred_check_branch
        %325 = sbr.rel (%p323) target = $region48
      $region47: #{tpu_custom_call.1} parent=5 // pred_region
        // Predicated region
        $region49: #{tpu_custom_call.1} parent=47 // pred_check
          %p326 = pneg %p43
        $region50: #{tpu_custom_call.1} parent=47 // pred_check_branch
          %328 = sbr.rel (%p326) target = $region52
        $region51: #{tpu_custom_call.1} parent=47 // pred_region
          %s329 = sand.u32 %s33, 1
          %s330 = scalar_lea.sflag [#allocation3], %s329
          %s331 = sand.u32 %s33, 1
          %s332 = smul.addr %s331, 8
          %s333 = scalar_lea.vmem [#allocation2], %s332
          %s335 = ssub.s32 128, 128
          %336 = vsyncadd %s330, %s335
          %s337 = smul.addr %s23, 128
          %s338 = scalar_lea.hbm %s0, %s337
          %s340 = sshll.u32 %s333, 4
          %s341 = int_to_ptr.vmem [resolvable:$true] %s340
          %343 = dma.hbm_to_vmem [thread:$0]  %s338, 128, %s341, %s330
        $region52: #{tpu_custom_call.1} parent=47 // pred_fallthru
          _
      $region48: #{tpu_custom_call.1} parent=5 // pred_fallthru
        _
      %p344 = scmp.le.s32.totalorder 1, %s23
      %p345 = scmp.lt.s32.totalorder %s23, 3
      %p346 = pnand %p344, %p345
      %p347 = pneg %p346
      // Predicated region
      $region53: #{tpu_custom_call.1} parent=5 // pred_check
        _
      $region54: #{tpu_custom_call.1} parent=5 // pred_check_branch
        %349 = sbr.rel (%p346) target = $region56
      $region55: #{tpu_custom_call.1} parent=5 // pred_region
        %s350 = ssub.s32 %s23, 1
        %s351 = sand.u32 %s36, 1
        %s352 = scalar_lea.sflag [#allocation3], %s351
        %s353 = sand.u32 %s36, 1
        %s354 = smul.addr %s353, 8
        %s355 = scalar_lea.vmem [#allocation2], %s354
        // Predicated region
        $region57: #{tpu_custom_call.1} parent=55 // pred_check
          %p356 = pneg %p49
        $region58: #{tpu_custom_call.1} parent=55 // pred_check_branch
          %358 = sbr.rel (%p356) target = $region60
        $region59: #{tpu_custom_call.1} parent=55 // pred_region
          %359 = dma.done %s352, 128
        $region60: #{tpu_custom_call.1} parent=55 // pred_fallthru
          _
        // Predicated region
        $region61: #{tpu_custom_call.1} parent=55 // pred_check
          %p360 = pneg %p70
        $region62: #{tpu_custom_call.1} parent=55 // pred_check_branch
          %362 = sbr.rel (%p360) target = $region64
        $region63: #{tpu_custom_call.1} parent=55 // pred_region
          %363 = dma.done [#allocation6], 1024
        $region64: #{tpu_custom_call.1} parent=55 // pred_fallthru
          _
        // Predicated region
        $region65: #{tpu_custom_call.1} parent=55 // pred_check
          %p364 = pneg %p112
        $region66: #{tpu_custom_call.1} parent=55 // pred_check_branch
          %366 = sbr.rel (%p364) target = $region68
        $region67: #{tpu_custom_call.1} parent=55 // pred_region
          %367 = dma.done [#allocation6], 1024
        $region68: #{tpu_custom_call.1} parent=55 // pred_fallthru
          _
        // Predicated region
        $region69: #{tpu_custom_call.1} parent=55 // pred_check
          %p368 = pneg %p154
        $region70: #{tpu_custom_call.1} parent=55 // pred_check_branch
          %370 = sbr.rel (%p368) target = $region72
        $region71: #{tpu_custom_call.1} parent=55 // pred_region
          %371 = dma.done [#allocation9], 1024
        $region72: #{tpu_custom_call.1} parent=55 // pred_fallthru
          _
        // Predicated region
        $region73: #{tpu_custom_call.1} parent=55 // pred_check
          %p372 = pneg %p196
        $region74: #{tpu_custom_call.1} parent=55 // pred_check_branch
          %374 = sbr.rel (%p372) target = $region76
        $region75: #{tpu_custom_call.1} parent=55 // pred_region
          %375 = dma.done [#allocation9], 1024
        $region76: #{tpu_custom_call.1} parent=55 // pred_fallthru
          _
        %s376 = sand.u32 %s36, 1
        %s377 = scalar_lea.sflag [#allocation3], %s376
        %s378 = sand.u32 %s36, 1
        %s379 = smul.addr %s378, 8
        %s380 = scalar_lea.vmem [#allocation2], %s379
        %p381 = pneg %p49
        %p382 = pneg %p46
        %p383 = pneg %p70
        %p384 = pneg %p67
        %p385 = pneg %p91
        %p386 = pneg %p88
        %p387 = pneg %p112
        %p388 = pneg %p109
        %p389 = pneg %p133
        %p390 = pneg %p130
        %p391 = pneg %p154
        %p392 = pneg %p151
        %p393 = pneg %p175
        %p394 = pneg %p172
        %p395 = pneg %p196
        %p396 = pneg %p193
        %p397 = pneg %p217
        %p398 = pneg %p214
        %p399 = pneg %p243
        %p400 = pneg %p240
        %s401 = sand.u32 %s230, 1
        %s402 = scalar_lea.sflag [#allocation4], %s401
        %s403 = sand.u32 %s230, 1
        %s404 = smul.addr %s403, 8
        %s405 = scalar_lea.vmem [#allocation11], %s404
        %v407 = vld [vmem:[%s355] sm:$0xff]
        %v408 = vld [vmem:[%s2] sm:$0x1]
        %v409 = vld [vmem:[%s4] sm:$0x1]
        %v410 = vld [vmem:[%s6] sm:$0x1]
        %v411 = vld [vmem:[%s8] sm:$0x1]
        %v412 = vld [vmem:[#allocation5] sm:$0xf]
        %v413 = vld [vmem:[#allocation5 + $0x4] sm:$0xf]
        %v414 = vld [vmem:[#allocation5 + $0x8] sm:$0xf]
        %v415 = vld [vmem:[#allocation5 + $0xc] sm:$0xf]
        %v416 = vld [vmem:[#allocation5 + $0x10] sm:$0xf]
        %v417 = vld [vmem:[#allocation5 + $0x14] sm:$0xf]
        %v418 = vld [vmem:[#allocation5 + $0x18] sm:$0xf]
        %v419 = vld [vmem:[#allocation5 + $0x1c] sm:$0xf]
        %v420 = vld [vmem:[#allocation5 + $0x20] sm:$0xf]
        %v421 = vld [vmem:[#allocation5 + $0x24] sm:$0xf]
        %v422 = vld [vmem:[#allocation5 + $0x28] sm:$0xf]
        %v423 = vld [vmem:[#allocation5 + $0x2c] sm:$0xf]
        %v424 = vld [vmem:[#allocation5 + $0x30] sm:$0xf]
        %v425 = vld [vmem:[#allocation5 + $0x34] sm:$0xf]
        %v426 = vld [vmem:[#allocation5 + $0x38] sm:$0xf]
        %v427 = vld [vmem:[#allocation5 + $0x3c] sm:$0xf]
        %v429 = vlaneseq
        %v430 = vshrl.u32 %v429, 7
        %v431 = vsub.s32 0, %v430
        %v432 = vrot.slane %v408, %v431
        %v450 = vunpack.c.l.b16 %v412
        %v451 = vunpack.c.l.b16 %v413
        %v452 = vunpack.c.l.b16 %v414
        %v453 = vunpack.c.l.b16 %v415
        %v454 = vunpack.c.l.b16 %v416
        %v455 = vunpack.c.l.b16 %v417
        %v456 = vunpack.c.l.b16 %v418
        %v457 = vunpack.c.l.b16 %v419
        %v458 = vunpack.c.l.b16 %v420
        %v459 = vunpack.c.l.b16 %v421
        %v460 = vunpack.c.l.b16 %v422
        %v461 = vunpack.c.l.b16 %v423
        %v462 = vunpack.c.l.b16 %v424
        %v463 = vunpack.c.l.b16 %v425
        %v464 = vunpack.c.l.b16 %v426
        %v465 = vunpack.c.l.b16 %v427
        %v466 = vpack.c.b16 %v451, %v450
        %v467 = vpack.c.b16 %v453, %v452
        %v468 = vpack.c.b16 %v455, %v454
        %v469 = vpack.c.b16 %v457, %v456
        %v470 = vpack.c.b16 %v459, %v458
        %v471 = vpack.c.b16 %v461, %v460
        %v472 = vpack.c.b16 %v463, %v462
        %v473 = vpack.c.b16 %v465, %v464
        %482 = vmatprep.subr.bf16.mxu0 0
        %483 = vmatpush1.bf16.msra.mxu0 %v466
        %484 = vmatprep.subr.bf16.mxu0 0
        %485 = vmatpush1.bf16.msra.mxu0 %v467
        %486 = vmatprep.subr.bf16.mxu0 0
        %487 = vmatpush1.bf16.msra.mxu0 %v468
        %488 = vmatprep.subr.bf16.mxu0 0
        %489 = vmatpush1.bf16.msra.mxu0 %v469
        %490 = vmatprep.subr.bf16.mxu0 0
        %491 = vmatpush1.bf16.msra.mxu0 %v470
        %492 = vmatprep.subr.bf16.mxu0 0
        %493 = vmatpush1.bf16.msra.mxu0 %v471
        %494 = vmatprep.subr.bf16.mxu0 0
        %495 = vmatpush1.bf16.msra.mxu0 %v472
        %496 = vmatprep.subr.bf16.mxu0 0
        %497 = vmatpush1.bf16.msra.mxu0 %v473
        %498 = vmatprep.subr.bf16.mxu0 0
        %499 = vmatpush1.bf16.msra.mxu0 0
        %500 = vmatprep.subr.bf16.mxu0 0
        %501 = vmatpush1.bf16.msra.mxu0 0
        %502 = vmatprep.subr.bf16.mxu0 0
        %503 = vmatpush1.bf16.msra.mxu0 0
        %504 = vmatprep.subr.bf16.mxu0 0
        %505 = vmatpush1.bf16.msra.mxu0 0
        %506 = vmatprep.subr.bf16.mxu0 0
        %507 = vmatpush1.bf16.msra.mxu0 0
        %508 = vmatprep.subr.bf16.mxu0 0
        %509 = vmatpush1.bf16.msra.mxu0 0
        %510 = vmatprep.subr.bf16.mxu0 0
        %511 = vmatpush1.bf16.msra.mxu0 0
        %512 = vmatprep.subr.bf16.mxu0 0
        %513 = vmatpush1.bf16.msra.mxu0 0
        %514 = vmatprep.mubr.f32.mxu0 0.0
        %515 = vmatmul.mubr.f32.gmra.mrb[0].mxu0 %v407
        %v516 = vpop.f32.mrb[0].mxu0
        %v517 = vadd.f32 %v432, %v516
        %v518 = vpop.f32.mrb[0].mxu0
        %519 = vdwg.mxu0
        %v520 = vmax.f32 %v517, -30.0
        %v521 = vmin.f32 %v520, 30.0
        %v522 = vmul.f32 %v521, 1.442695
        %v523 = vpow.pop %v522
        %v524 = vadd.f32 %v523, 2.0
        %v525 = vmul.f32 %v523, %v524
        %v526 = vmul.f32 %v517, %v525
        %v527 = vadd.f32 %v525, 2.0
        %v528 = vrcp.pop %v527
        %v529 = vmul.f32 %v526, %v528
        %v530 = vld [vmem:[#allocation7] sm:$0xf]
        %v531 = vld [vmem:[#allocation7 + $0x4] sm:$0xf]
        %v532 = vld [vmem:[#allocation7 + $0x8] sm:$0xf]
        %v533 = vld [vmem:[#allocation7 + $0xc] sm:$0xf]
        %v534 = vld [vmem:[#allocation7 + $0x10] sm:$0xf]
        %v535 = vld [vmem:[#allocation7 + $0x14] sm:$0xf]
        %v536 = vld [vmem:[#allocation7 + $0x18] sm:$0xf]
        %v537 = vld [vmem:[#allocation7 + $0x1c] sm:$0xf]
        %v538 = vld [vmem:[#allocation7 + $0x20] sm:$0xf]
        %v539 = vld [vmem:[#allocation7 + $0x24] sm:$0xf]
        %v540 = vld [vmem:[#allocation7 + $0x28] sm:$0xf]
        %v541 = vld [vmem:[#allocation7 + $0x2c] sm:$0xf]
        %v542 = vld [vmem:[#allocation7 + $0x30] sm:$0xf]
        %v543 = vld [vmem:[#allocation7 + $0x34] sm:$0xf]
        %v544 = vld [vmem:[#allocation7 + $0x38] sm:$0xf]
        %v545 = vld [vmem:[#allocation7 + $0x3c] sm:$0xf]
        %v547 = vlaneseq
        %v548 = vshrl.u32 %v547, 7
        %v549 = vsub.s32 0, %v548
        %v550 = vrot.slane %v409, %v549
        %v568 = vunpack.c.l.b16 %v530
        %v569 = vunpack.c.l.b16 %v531
        %v570 = vunpack.c.l.b16 %v532
        %v571 = vunpack.c.l.b16 %v533
        %v572 = vunpack.c.l.b16 %v534
        %v573 = vunpack.c.l.b16 %v535
        %v574 = vunpack.c.l.b16 %v536
        %v575 = vunpack.c.l.b16 %v537
        %v576 = vunpack.c.l.b16 %v538
        %v577 = vunpack.c.l.b16 %v539
        %v578 = vunpack.c.l.b16 %v540
        %v579 = vunpack.c.l.b16 %v541
        %v580 = vunpack.c.l.b16 %v542
        %v581 = vunpack.c.l.b16 %v543
        %v582 = vunpack.c.l.b16 %v544
        %v583 = vunpack.c.l.b16 %v545
        %v584 = vpack.c.b16 %v569, %v568
        %v585 = vpack.c.b16 %v571, %v570
        %v586 = vpack.c.b16 %v573, %v572
        %v587 = vpack.c.b16 %v575, %v574
        %v588 = vpack.c.b16 %v577, %v576
        %v589 = vpack.c.b16 %v579, %v578
        %v590 = vpack.c.b16 %v581, %v580
        %v591 = vpack.c.b16 %v583, %v582
        %600 = vmatprep.subr.bf16.mxu0 0
        %601 = vmatpush1.bf16.msra.mxu0 %v584
        %602 = vmatprep.subr.bf16.mxu0 0
        %603 = vmatpush1.bf16.msra.mxu0 %v585
        %604 = vmatprep.subr.bf16.mxu0 0
        %605 = vmatpush1.bf16.msra.mxu0 %v586
        %606 = vmatprep.subr.bf16.mxu0 0
        %607 = vmatpush1.bf16.msra.mxu0 %v587
        %608 = vmatprep.subr.bf16.mxu0 0
        %609 = vmatpush1.bf16.msra.mxu0 %v588
        %610 = vmatprep.subr.bf16.mxu0 0
        %611 = vmatpush1.bf16.msra.mxu0 %v589
        %612 = vmatprep.subr.bf16.mxu0 0
        %613 = vmatpush1.bf16.msra.mxu0 %v590
        %614 = vmatprep.subr.bf16.mxu0 0
        %615 = vmatpush1.bf16.msra.mxu0 %v591
        %616 = vmatprep.subr.bf16.mxu0 0
        %617 = vmatpush1.bf16.msra.mxu0 0
        %618 = vmatprep.subr.bf16.mxu0 0
        %619 = vmatpush1.bf16.msra.mxu0 0
        %620 = vmatprep.subr.bf16.mxu0 0
        %621 = vmatpush1.bf16.msra.mxu0 0
        %622 = vmatprep.subr.bf16.mxu0 0
        %623 = vmatpush1.bf16.msra.mxu0 0
        %624 = vmatprep.subr.bf16.mxu0 0
        %625 = vmatpush1.bf16.msra.mxu0 0
        %626 = vmatprep.subr.bf16.mxu0 0
        %627 = vmatpush1.bf16.msra.mxu0 0
        %628 = vmatprep.subr.bf16.mxu0 0
        %629 = vmatpush1.bf16.msra.mxu0 0
        %630 = vmatprep.subr.bf16.mxu0 0
        %631 = vmatpush1.bf16.msra.mxu0 0
        %632 = vmatprep.mubr.f32.mxu0 0.0
        %633 = vmatmul.mubr.f32.gmra.mrb[0].mxu0 %v529
        %v634 = vpop.f32.mrb[0].mxu0
        %v635 = vadd.f32 %v550, %v634
        %v636 = vpop.f32.mrb[0].mxu0
        %637 = vdwg.mxu0
        %v638 = vmax.f32 %v635, -30.0
        %v639 = vmin.f32 %v638, 30.0
        %v640 = vmul.f32 %v639, 1.442695
        %v641 = vpow.pop %v640
        %v642 = vadd.f32 %v641, 2.0
        %v643 = vmul.f32 %v641, %v642
        %v644 = vmul.f32 %v635, %v643
        %v645 = vadd.f32 %v643, 2.0
        %v646 = vrcp.pop %v645
        %v647 = vmul.f32 %v644, %v646
        %v648 = vld [vmem:[#allocation8] sm:$0xf]
        %v649 = vld [vmem:[#allocation8 + $0x4] sm:$0xf]
        %v650 = vld [vmem:[#allocation8 + $0x8] sm:$0xf]
        %v651 = vld [vmem:[#allocation8 + $0xc] sm:$0xf]
        %v652 = vld [vmem:[#allocation8 + $0x10] sm:$0xf]
        %v653 = vld [vmem:[#allocation8 + $0x14] sm:$0xf]
        %v654 = vld [vmem:[#allocation8 + $0x18] sm:$0xf]
        %v655 = vld [vmem:[#allocation8 + $0x1c] sm:$0xf]
        %v656 = vld [vmem:[#allocation8 + $0x20] sm:$0xf]
        %v657 = vld [vmem:[#allocation8 + $0x24] sm:$0xf]
        %v658 = vld [vmem:[#allocation8 + $0x28] sm:$0xf]
        %v659 = vld [vmem:[#allocation8 + $0x2c] sm:$0xf]
        %v660 = vld [vmem:[#allocation8 + $0x30] sm:$0xf]
        %v661 = vld [vmem:[#allocation8 + $0x34] sm:$0xf]
        %v662 = vld [vmem:[#allocation8 + $0x38] sm:$0xf]
        %v663 = vld [vmem:[#allocation8 + $0x3c] sm:$0xf]
        %v665 = vlaneseq
        %v666 = vshrl.u32 %v665, 7
        %v667 = vsub.s32 0, %v666
        %v668 = vrot.slane %v410, %v667
        %v686 = vunpack.c.l.b16 %v648
        %v687 = vunpack.c.l.b16 %v649
        %v688 = vunpack.c.l.b16 %v650
        %v689 = vunpack.c.l.b16 %v651
        %v690 = vunpack.c.l.b16 %v652
        %v691 = vunpack.c.l.b16 %v653
        %v692 = vunpack.c.l.b16 %v654
        %v693 = vunpack.c.l.b16 %v655
        %v694 = vunpack.c.l.b16 %v656
        %v695 = vunpack.c.l.b16 %v657
        %v696 = vunpack.c.l.b16 %v658
        %v697 = vunpack.c.l.b16 %v659
        %v698 = vunpack.c.l.b16 %v660
        %v699 = vunpack.c.l.b16 %v661
        %v700 = vunpack.c.l.b16 %v662
        %v701 = vunpack.c.l.b16 %v663
        %v702 = vpack.c.b16 %v687, %v686
        %v703 = vpack.c.b16 %v689, %v688
        %v704 = vpack.c.b16 %v691, %v690
        %v705 = vpack.c.b16 %v693, %v692
        %v706 = vpack.c.b16 %v695, %v694
        %v707 = vpack.c.b16 %v697, %v696
        %v708 = vpack.c.b16 %v699, %v698
        %v709 = vpack.c.b16 %v701, %v700
        %718 = vmatprep.subr.bf16.mxu0 0
        %719 = vmatpush1.bf16.msra.mxu0 %v702
        %720 = vmatprep.subr.bf16.mxu0 0
        %721 = vmatpush1.bf16.msra.mxu0 %v703
        %722 = vmatprep.subr.bf16.mxu0 0
        %723 = vmatpush1.bf16.msra.mxu0 %v704
        %724 = vmatprep.subr.bf16.mxu0 0
        %725 = vmatpush1.bf16.msra.mxu0 %v705
        %726 = vmatprep.subr.bf16.mxu0 0
        %727 = vmatpush1.bf16.msra.mxu0 %v706
        %728 = vmatprep.subr.bf16.mxu0 0
        %729 = vmatpush1.bf16.msra.mxu0 %v707
        %730 = vmatprep.subr.bf16.mxu0 0
        %731 = vmatpush1.bf16.msra.mxu0 %v708
        %732 = vmatprep.subr.bf16.mxu0 0
        %733 = vmatpush1.bf16.msra.mxu0 %v709
        %734 = vmatprep.subr.bf16.mxu0 0
        %735 = vmatpush1.bf16.msra.mxu0 0
        %736 = vmatprep.subr.bf16.mxu0 0
        %737 = vmatpush1.bf16.msra.mxu0 0
        %738 = vmatprep.subr.bf16.mxu0 0
        %739 = vmatpush1.bf16.msra.mxu0 0
        %740 = vmatprep.subr.bf16.mxu0 0
        %741 = vmatpush1.bf16.msra.mxu0 0
        %742 = vmatprep.subr.bf16.mxu0 0
        %743 = vmatpush1.bf16.msra.mxu0 0
        %744 = vmatprep.subr.bf16.mxu0 0
        %745 = vmatpush1.bf16.msra.mxu0 0
        %746 = vmatprep.subr.bf16.mxu0 0
        %747 = vmatpush1.bf16.msra.mxu0 0
        %748 = vmatprep.subr.bf16.mxu0 0
        %749 = vmatpush1.bf16.msra.mxu0 0
        %750 = vmatprep.mubr.f32.mxu0 0.0
        %751 = vmatmul.mubr.f32.gmra.mrb[0].mxu0 %v647
        %v752 = vpop.f32.mrb[0].mxu0
        %v753 = vadd.f32 %v668, %v752
        %v754 = vpop.f32.mrb[0].mxu0
        %755 = vdwg.mxu0
        %v756 = vadd.f32 %v517, %v753
        %v757 = vld [vmem:[#allocation10] sm:$0xf]
        %v758 = vld [vmem:[#allocation10 + $0x4] sm:$0xf]
        %v759 = vld [vmem:[#allocation10 + $0x8] sm:$0xf]
        %v760 = vld [vmem:[#allocation10 + $0xc] sm:$0xf]
        %v761 = vld [vmem:[#allocation10 + $0x10] sm:$0xf]
        %v762 = vld [vmem:[#allocation10 + $0x14] sm:$0xf]
        %v763 = vld [vmem:[#allocation10 + $0x18] sm:$0xf]
        %v764 = vld [vmem:[#allocation10 + $0x1c] sm:$0xf]
        %v765 = vld [vmem:[#allocation10 + $0x20] sm:$0xf]
        %v766 = vld [vmem:[#allocation10 + $0x24] sm:$0xf]
        %v767 = vld [vmem:[#allocation10 + $0x28] sm:$0xf]
        %v768 = vld [vmem:[#allocation10 + $0x2c] sm:$0xf]
        %v769 = vld [vmem:[#allocation10 + $0x30] sm:$0xf]
        %v770 = vld [vmem:[#allocation10 + $0x34] sm:$0xf]
        %v771 = vld [vmem:[#allocation10 + $0x38] sm:$0xf]
        %v772 = vld [vmem:[#allocation10 + $0x3c] sm:$0xf]
        %v774 = vlaneseq
        %v775 = vshrl.u32 %v774, 7
        %v776 = vsub.s32 0, %v775
        %v777 = vrot.slane %v411, %v776
        %v795 = vunpack.c.l.b16 %v757
        %v796 = vunpack.c.l.b16 %v758
        %v797 = vunpack.c.l.b16 %v759
        %v798 = vunpack.c.l.b16 %v760
        %v799 = vunpack.c.l.b16 %v761
        %v800 = vunpack.c.l.b16 %v762
        %v801 = vunpack.c.l.b16 %v763
        %v802 = vunpack.c.l.b16 %v764
        %v803 = vunpack.c.l.b16 %v765
        %v804 = vunpack.c.l.b16 %v766
        %v805 = vunpack.c.l.b16 %v767
        %v806 = vunpack.c.l.b16 %v768
        %v807 = vunpack.c.l.b16 %v769
        %v808 = vunpack.c.l.b16 %v770
        %v809 = vunpack.c.l.b16 %v771
        %v810 = vunpack.c.l.b16 %v772
        %v811 = vpack.c.b16 %v796, %v795
        %v812 = vpack.c.b16 %v798, %v797
        %v813 = vpack.c.b16 %v800, %v799
        %v814 = vpack.c.b16 %v802, %v801
        %v815 = vpack.c.b16 %v804, %v803
        %v816 = vpack.c.b16 %v806, %v805
        %v817 = vpack.c.b16 %v808, %v807
        %v818 = vpack.c.b16 %v810, %v809
        %827 = vmatprep.subr.bf16.mxu0 0
        %828 = vmatpush1.bf16.msra.mxu0 %v811
        %829 = vmatprep.subr.bf16.mxu0 0
        %830 = vmatpush1.bf16.msra.mxu0 %v812
        %831 = vmatprep.subr.bf16.mxu0 0
        %832 = vmatpush1.bf16.msra.mxu0 %v813
        %833 = vmatprep.subr.bf16.mxu0 0
        %834 = vmatpush1.bf16.msra.mxu0 %v814
        %835 = vmatprep.subr.bf16.mxu0 0
        %836 = vmatpush1.bf16.msra.mxu0 %v815
        %837 = vmatprep.subr.bf16.mxu0 0
        %838 = vmatpush1.bf16.msra.mxu0 %v816
        %839 = vmatprep.subr.bf16.mxu0 0
        %840 = vmatpush1.bf16.msra.mxu0 %v817
        %841 = vmatprep.subr.bf16.mxu0 0
        %842 = vmatpush1.bf16.msra.mxu0 %v818
        %843 = vmatprep.subr.bf16.mxu0 0
        %844 = vmatpush1.bf16.msra.mxu0 0
        %845 = vmatprep.subr.bf16.mxu0 0
        %846 = vmatpush1.bf16.msra.mxu0 0
        %847 = vmatprep.subr.bf16.mxu0 0
        %848 = vmatpush1.bf16.msra.mxu0 0
        %849 = vmatprep.subr.bf16.mxu0 0
        %850 = vmatpush1.bf16.msra.mxu0 0
        %851 = vmatprep.subr.bf16.mxu0 0
        %852 = vmatpush1.bf16.msra.mxu0 0
        %853 = vmatprep.subr.bf16.mxu0 0
        %854 = vmatpush1.bf16.msra.mxu0 0
        %855 = vmatprep.subr.bf16.mxu0 0
        %856 = vmatpush1.bf16.msra.mxu0 0
        %857 = vmatprep.subr.bf16.mxu0 0
        %858 = vmatpush1.bf16.msra.mxu0 0
        %859 = vmatprep.mubr.f32.mxu0 0.0
        %860 = vmatmul.mubr.f32.gmra.mrb[0].mxu0 %v756
        %v861 = vpop.f32.mrb[0].mxu0
        %v862 = vadd.f32 %v777, %v861
        %v863 = vpop.f32.mrb[0].mxu0
        %864 = vdwg.mxu0
        %865 = vst [vmem:[%s405] sm:$0xff] %v862
        %s866 = sand.u32 %s230, 1
        %s867 = scalar_lea.sflag [#allocation4], %s866
        %s868 = sand.u32 %s230, 1
        %s869 = smul.addr %s868, 8
        %s870 = scalar_lea.vmem [#allocation11], %s869
        // Predicated region
        $region77: #{tpu_custom_call.1} parent=55 // pred_check
          %p871 = pneg %p240
        $region78: #{tpu_custom_call.1} parent=55 // pred_check_branch
          %873 = sbr.rel (%p871) target = $region80
        $region79: #{tpu_custom_call.1} parent=55 // pred_region
          %s875 = ssub.s32 128, 128
          %876 = vsyncadd %s867, %s875
          %s877 = smul.addr %s28, 128
          %s878 = scalar_lea.hbm %s9, %s877
          %s880 = sshll.u32 %s870, 4
          %s881 = int_to_ptr.vmem [resolvable:$true] %s880
          %883 = dma.vmem_to_hbm [thread:$0]  %s881, 128, %s878, %s867
        $region80: #{tpu_custom_call.1} parent=55 // pred_fallthru
          _
      $region56: #{tpu_custom_call.1} parent=5 // pred_fallthru
        _
      %p884 = scmp.le.s32.totalorder 2, %s23
      // Predicated region
      $region81: #{tpu_custom_call.1} parent=5 // pred_check
        %p885 = pneg %p884
      $region82: #{tpu_custom_call.1} parent=5 // pred_check_branch
        %887 = sbr.rel (%p885) target = $region84
      $region83: #{tpu_custom_call.1} parent=5 // pred_region
        %s888 = ssub.s32 %s23, 2
        // Predicated region
        $region85: #{tpu_custom_call.1} parent=83 // pred_check
          %p889 = pneg %p246
        $region86: #{tpu_custom_call.1} parent=83 // pred_check_branch
          %891 = sbr.rel (%p889) target = $region88
        $region87: #{tpu_custom_call.1} parent=83 // pred_region
          %s892 = sand.u32 %s231, 1
          %s893 = scalar_lea.sflag [#allocation4], %s892
          %s894 = sand.u32 %s231, 1
          %s895 = smul.addr %s894, 8
          %s896 = scalar_lea.vmem [#allocation11], %s895
          %897 = dma.done %s893, 128
        $region88: #{tpu_custom_call.1} parent=83 // pred_fallthru
          _
      $region84: #{tpu_custom_call.1} parent=5 // pred_fallthru
        _
    $region6: #{tpu_custom_call.1} parent=1 // loop_footer
      %s27 = sadd.s32 1, %s23
    $region7: #{tpu_custom_call.1} parent=1 // loop_footer_branch
      %22 = sbr.rel target = $region3
    $region8: #{tpu_custom_call.1} parent=1 // loop_exit
      _
    %898 = vsyncpa [#allocation3], 1
    %s899 = scalar_lea.sflag [#allocation3], 1
    %900 = vsyncpa %s899, 1
    %901 = vsyncpa [#allocation6], 1
    %902 = vsyncpa [#allocation9], 1
    %903 = vsyncpa [#allocation4], 1
    %s904 = scalar_lea.sflag [#allocation4], 1
    %905 = vsyncpa %s904, 1

</llo_original>
